<compile_context>
chip_gen: v7x
topology: tpu7x:2x2x1
jax: 0.10.0
libtpu: 0.0.40
codegen_flags: <defaults>
</compile_context>

<pallas_src>
import jax
import jax.numpy as jnp
from jax.experimental import pallas as pl
from jax.experimental.pallas import tpu as pltpu


def _elu(x):
    # ELU (alpha=1.0).  Pure select: exp() of large positive values only ever
    # lives in the discarded branch, so no clamp is needed on the forward pass.
    return jnp.where(x > 0, x, jnp.exp(x) - 1.0)


def _model_kernel(x_ref, p_ref, o_ref):
    # x_ref: (1, TB)  f32 -- batch on the lane axis
    # p_ref: (33, 35) f32 packed parameters (see _pack_params)
    # o_ref: (1, TB)  f32
    xr = x_ref[...]                               # (1, TB)

    w2t = p_ref[0:32, 0:32]                       # (32, 32) block-diag W2^T
    w1t = p_ref[0:32, 32:33]                      # (32, 1)  stacked W1^T
    b1t = p_ref[0:32, 33:34]                      # (32, 1)  stacked b1^T
    b2t = p_ref[0:32, 34:35]                      # (32, 1)  stacked b2^T
    w3r = p_ref[32:33, 0:32]                      # (1, 32)  [beta*w3_prior^T, w3_train^T]
    b3 = p_ref[32:33, 32:33]                      # (1, 1)   beta*b3_prior + b3_train

    # Layer 1 on the MXU (outer product, K=1), both nets at once.
    h1 = _elu(jnp.dot(w1t, xr, preferred_element_type=jnp.float32) + b1t)   # (32, TB)
    # Layer 2: single block-diagonal MXU matmul for both nets.
    h2 = _elu(jnp.dot(w2t, h1, preferred_element_type=jnp.float32) + b2t)   # (32, TB)
    # Layer 3 + beta-weighted sum as one MXU matmul (no VPU mul / XLU reduce).
    y = jnp.dot(w3r, h2, preferred_element_type=jnp.float32) + b3           # (1, TB)

    o_ref[...] = y.astype(o_ref.dtype)


def _pack_params(prior, trainable, beta):
    """Pack both nets (+ beta) into a single (33, 35) f32 slab.

    Layout:
      rows 0:32, cols 0:32  block-diag of transposed layer-2 weights
      rows 0:32, col 32     stacked transposed layer-1 weights (prior rows 0:16)
      rows 0:32, col 33     stacked layer-1 biases
      rows 0:32, col 34     stacked layer-2 biases
      row 32,   cols 0:32   row-vector [beta * w3_prior^T, w3_trainable^T]
      row 32,   col 32      beta * b3_prior + b3_trainable
    """
    f32 = jnp.float32
    beta = jnp.asarray(beta, f32)

    w1t = jnp.concatenate([prior["w1"].T, trainable["w1"].T], axis=0).astype(f32)  # (32,1)
    b1t = jnp.concatenate([prior["b1"].T, trainable["b1"].T], axis=0).astype(f32)  # (32,1)

    z = jnp.zeros((16, 16), f32)
    w2t = jnp.block([[prior["w2"].T.astype(f32), z],
                     [z, trainable["w2"].T.astype(f32)]])                           # (32,32)
    b2t = jnp.concatenate([prior["b2"].T, trainable["b2"].T], axis=0).astype(f32)   # (32,1)

    w3r = jnp.concatenate([beta * prior["w3"].T, trainable["w3"].T], axis=1).astype(f32)  # (1,32)
    b3 = (beta * prior["b3"] + trainable["b3"]).reshape(1, 1).astype(f32)                  # (1,1)

    top = jnp.concatenate([w2t, w1t, b1t, b2t], axis=1)                  # (32, 35)
    bot = jnp.concatenate([w3r, b3, jnp.zeros((1, 2), f32)], axis=1)     # (1, 35)
    return jnp.concatenate([top, bot], axis=0)                           # (33, 35)


def model_forward(x, prior_params, trainable_params, beta, *, tb=16384):
    """x: (N, 1) float32. Returns (N, 1) = beta*prior(x) + trainable(x)."""
    N, F = x.shape
    assert F == 1

    # Lane-dense tile: largest multiple of 128 not exceeding the (rounded-up)
    # batch, capped at `tb`.  Keep >= 2 grid steps when possible so the
    # "parallel" axis can be split across both v7x TensorCores.
    n128 = pl.cdiv(N, 128)                                 # batch in 128-lane chunks
    tb = max(128, (min(int(tb), n128 * 128) // 128) * 128)
    if n128 >= 2 and pl.cdiv(N, tb) < 2:
        tb = ((n128 + 1) // 2) * 128
    grid = pl.cdiv(N, tb)

    # No explicit padding: partial last block handled by Pallas (reads of the
    # ragged tail are garbage but lane-independent; OOB writes are dropped).
    xt = x.reshape(1, N).astype(jnp.float32)
    params = _pack_params(prior_params, trainable_params, beta)

    cost = pl.CostEstimate(
        flops=2 * 1120 * N,                 # ~1088 MACs + elementwise per element
        transcendentals=64 * N,             # 2 ELU layers x 32 hidden units
        bytes_accessed=8 * N + params.size * 4,
    )

    out_t = pl.pallas_call(
        _model_kernel,
        out_shape=jax.ShapeDtypeStruct((1, N), jnp.float32),
        grid_spec=pltpu.PrefetchScalarGridSpec(
            num_scalar_prefetch=0,
            grid=(grid,),
            in_specs=[
                pl.BlockSpec((1, tb), lambda i: (0, i)),          # x tile (lane-dense)
                pl.BlockSpec(params.shape, lambda i: (0, 0)),     # full packed params
            ],
            out_specs=pl.BlockSpec((1, tb), lambda i: (0, i)),     # lane-dense output
        ),
        compiler_params=pltpu.CompilerParams(
            dimension_semantics=("parallel",),
            vmem_limit_bytes=32 * 1024 * 1024),
        cost_estimate=cost,
    )(xt, params)

    return out_t.reshape(N, 1).astype(x.dtype)


# ---------------- reference / init (pure JAX, for verification) ----------------

def _xavier_uniform(key, shape):
    fan_in, fan_out = shape[0], shape[1]
    limit = (6.0 / (fan_in + fan_out)) ** 0.5
    return jax.random.uniform(key, shape, jnp.float32, -limit, limit)


def init_generic_net(key):
    k1, k2, k3 = jax.random.split(key, 3)
    return {
        "w1": _xavier_uniform(k1, (1, 16)),
        "b1": jnp.full((1, 16), 0.01, jnp.float32),
        "w2": _xavier_uniform(k2, (16, 16)),
        "b2": jnp.full((1, 16), 0.01, jnp.float32),
        "w3": _xavier_uniform(k3, (16, 1)),
        "b3": jnp.full((1, 1), 0.01, jnp.float32),
    }


def reference_forward(x, prior_params, trainable_params, beta):
    def mlp(params):
        h = jax.nn.elu(x @ params["w1"] + params["b1"])
        h = jax.nn.elu(h @ params["w2"] + params["b2"])
        return h @ params["w3"] + params["b3"]
    return beta * mlp(prior_params) + mlp(trainable_params)


if __name__ == "__main__":
    key = jax.random.PRNGKey(0)
    kx, kp, kt, kx2 = jax.random.split(key, 4)

    beta = 0.5
    prior_params = init_generic_net(kp)
    trainable_params = init_generic_net(kt)

    # Small batch (single ragged 128-wide tile, grid=(1,)).
    N = 64
    x = jax.random.normal(kx, (N, 1), jnp.float32)
    out = jax.block_until_ready(model_forward(x, prior_params, trainable_params, beta))
    ref = reference_forward(x, prior_params, trainable_params, beta)
    assert out.shape == (N, 1)
    assert jnp.allclose(out, ref, atol=2e-5, rtol=2e-5)

    # Non-multiple batch (exercises ragged last block + 2-step parallel grid).
    N2 = 1000
    x2 = jax.random.normal(kx2, (N2, 1), jnp.float32)
    out2 = jax.block_until_ready(model_forward(x2, prior_params, trainable_params, beta))
    ref2 = reference_forward(x2, prior_params, trainable_params, beta)
    assert out2.shape == (N2, 1)
    assert jnp.allclose(out2, ref2, atol=2e-5, rtol=2e-5)

    print("KERNEL_OK")
</pallas_src>

<mosaic_0001>
module attributes {stable_mosaic.version = 11 : i64} {
  func.func @_model_kernel(%arg0: i32, %arg1: memref<1x128xf32, #tpu.memory_space<vmem>>, %arg2: memref<33x35xf32, #tpu.memory_space<vmem>>, %arg3: memref<1x128xf32, #tpu.memory_space<vmem>>) attributes {dimension_semantics = [#tpu.dimension_semantics<parallel>], iteration_bounds = array<i64: 1>, scalar_prefetch = 0 : i64, scratch_operands = 0 : i64, tpu.core_type = #tpu.core_type<tc>, window_params = [{transform_indices = @transform_0, window_bounds = array<i64: 1, 128>}, {pipeline_mode = #tpu.pipeline_mode<synchronous>, transform_indices = @transform_1, window_bounds = array<i64: 33, 35>}, {transform_indices = @transform_2, window_bounds = array<i64: 1, 128>}]} {
    %c0 = arith.constant 0 : index
    %c0_0 = arith.constant 0 : index
    %0 = vector.load %arg1[%c0, %c0_0] : memref<1x128xf32, #tpu.memory_space<vmem>>, vector<1x128xf32>
    %c0_1 = arith.constant 0 : index
    %c0_2 = arith.constant 0 : index
    %1 = vector.load %arg2[%c0_1, %c0_2] : memref<33x35xf32, #tpu.memory_space<vmem>>, vector<32x32xf32>
    %c0_3 = arith.constant 0 : index
    %c32 = arith.constant 32 : index
    %2 = vector.load %arg2[%c0_3, %c32] : memref<33x35xf32, #tpu.memory_space<vmem>>, vector<32x1xf32>
    %c0_4 = arith.constant 0 : index
    %c33 = arith.constant 33 : index
    %3 = vector.load %arg2[%c0_4, %c33] : memref<33x35xf32, #tpu.memory_space<vmem>>, vector<32x1xf32>
    %c0_5 = arith.constant 0 : index
    %c34 = arith.constant 34 : index
    %4 = vector.load %arg2[%c0_5, %c34] : memref<33x35xf32, #tpu.memory_space<vmem>>, vector<32x1xf32>
    %c32_6 = arith.constant 32 : index
    %c0_7 = arith.constant 0 : index
    %5 = vector.load %arg2[%c32_6, %c0_7] : memref<33x35xf32, #tpu.memory_space<vmem>>, vector<1x32xf32>
    %c32_8 = arith.constant 32 : index
    %c32_9 = arith.constant 32 : index
    %6 = vector.load %arg2[%c32_8, %c32_9] : memref<33x35xf32, #tpu.memory_space<vmem>>, vector<1x1xf32>
    %cst = arith.constant dense<0.000000e+00> : vector<32x128xf32>
    %7 = tpu.matmul %2, %0, %cst {dimension_numbers = #tpu.dot_dimension_numbers<[1], [0], [0], [1], [0, 0, 1, 1], [], []>} : vector<32x1xf32>, vector<1x128xf32>, vector<32x128xf32> -> vector<32x128xf32>
    %8 = vector.broadcast %3 : vector<32x1xf32> to vector<32x128xf32>
    %9 = arith.addf %7, %8 : vector<32x128xf32>
    %cst_10 = arith.constant 0.000000e+00 : f32
    %10 = vector.broadcast %cst_10 : f32 to vector<32x128xf32>
    %11 = arith.cmpf ogt, %9, %10 : vector<32x128xf32>
    %12 = math.exp %9 : vector<32x128xf32>
    %cst_11 = arith.constant 1.000000e+00 : f32
    %13 = vector.broadcast %cst_11 : f32 to vector<32x128xf32>
    %14 = arith.subf %12, %13 : vector<32x128xf32>
    %15 = arith.select %11, %9, %14 : vector<32x128xi1>, vector<32x128xf32>
    %cst_12 = arith.constant dense<0.000000e+00> : vector<32x128xf32>
    %16 = tpu.matmul %1, %15, %cst_12 {dimension_numbers = #tpu.dot_dimension_numbers<[1], [0], [0], [1], [0, 0, 1, 1], [], []>} : vector<32x32xf32>, vector<32x128xf32>, vector<32x128xf32> -> vector<32x128xf32>
    %17 = vector.broadcast %4 : vector<32x1xf32> to vector<32x128xf32>
    %18 = arith.addf %16, %17 : vector<32x128xf32>
    %cst_13 = arith.constant 0.000000e+00 : f32
    %19 = vector.broadcast %cst_13 : f32 to vector<32x128xf32>
    %20 = arith.cmpf ogt, %18, %19 : vector<32x128xf32>
    %21 = math.exp %18 : vector<32x128xf32>
    %cst_14 = arith.constant 1.000000e+00 : f32
    %22 = vector.broadcast %cst_14 : f32 to vector<32x128xf32>
    %23 = arith.subf %21, %22 : vector<32x128xf32>
    %24 = arith.select %20, %18, %23 : vector<32x128xi1>, vector<32x128xf32>
    %cst_15 = arith.constant dense<0.000000e+00> : vector<1x128xf32>
    %25 = tpu.matmul %5, %24, %cst_15 {dimension_numbers = #tpu.dot_dimension_numbers<[1], [0], [0], [1], [0, 0, 1, 1], [], []>} : vector<1x32xf32>, vector<32x128xf32>, vector<1x128xf32> -> vector<1x128xf32>
    %26 = vector.broadcast %6 : vector<1x1xf32> to vector<1x128xf32>
    %27 = arith.addf %25, %26 : vector<1x128xf32>
    %c0_16 = arith.constant 0 : index
    %c0_17 = arith.constant 0 : index
    %28 = vector.load %arg3[%c0_16, %c0_17] : memref<1x128xf32, #tpu.memory_space<vmem>>, vector<1x128xf32>
    tpu.vector_store %arg3[%c0_16, %c0_17], %27 {strides = array<i32>} : memref<1x128xf32, #tpu.memory_space<vmem>>, vector<1x128xf32>,
    return
  }
  func.func @transform_0(%arg0: i32) -> (i32, i32) {
    %c0_i32 = arith.constant 0 : i32
    %c0_i32_0 = arith.constant 0 : i32
    return %c0_i32, %arg0 : i32, i32
  }
  func.func @transform_1(%arg0: i32) -> (i32, i32) {
    %c0_i32 = arith.constant 0 : i32
    %c0_i32_0 = arith.constant 0 : i32
    %c0_i32_1 = arith.constant 0 : i32
    return %c0_i32, %c0_i32_0 : i32, i32
  }
  func.func @transform_2(%arg0: i32) -> (i32, i32) {
    %c0_i32 = arith.constant 0 : i32
    %c0_i32_0 = arith.constant 0 : i32
    return %c0_i32, %arg0 : i32, i32
  }
}

</mosaic_0001>

<llo_original>
// kernel: tpu_custom_call.1
$region0: #{tpu_custom_call.1}
  #allocation0 [shape = 'u32[]', space=smem, size = 0x4, offset = 0x4, fixed_abs, tag = 'smem constant byte address 0x4 - core index']
  #allocation1 [shape = 'u32[144,128]{1,0:T(1,128)}', space=vmem, size = 0x12000, scoped, tag = 'internal scratch']
  %s0 = inlined_call_operand.hbm [shape: f32[1,64], index: 0, kind: input, shape index: {}]
  %s1 = inlined_call_operand.hbm [shape: f32[33,35], index: 1, kind: input, shape index: {}]
  %s2 = inlined_call_operand.hbm [shape: f32[1,64], index: 2, kind: output, shape index: {}]
  %s3 = sld [smem:[#allocation0]]
  $region26: #{tpu_custom_call.1} parent=0
    _
  %s5 = ssub.s32 1, %s3
  %s6 = scalar_select 0, %s5, %s3
  $region1: #{tpu_custom_call.1} parent=0
    #allocation2 [shape = 'u8[512]{0}', space=vmem, size = 0x400, scoped, tag = 'input window, operand 0, single buffered']
    #allocation3 [shape = 's32[1]{0}', space=sflag, size = 0x4, scoped, tag = 'scoped memory for tpu_custom_call.1']
    #allocation4 [shape = 's32[1]{0}', space=sflag, size = 0x4, scoped, tag = 'scoped memory for tpu_custom_call.1']
    #allocation5 [shape = 'u8[20480]{0}', space=vmem, size = 0x5000, scoped, tag = 'input window, operand 1, single buffered']
    #allocation6 [shape = 's32[1]{0}', space=sflag, size = 0x4, scoped, tag = 'scoped memory for tpu_custom_call.1']
    #allocation7 [shape = 'u8[512]{0}', space=vmem, size = 0x400, scoped, tag = 'output window, operand 0, single buffered']
    %7 = vsyncpa [#allocation3], 0
    %8 = vsyncpa [#allocation6], 0
    %9 = vsyncpa [#allocation4], 0
    // Predicated region
    $region2: #{tpu_custom_call.1} parent=1 // pred_check
      _
    $region3: #{tpu_custom_call.1} parent=1 // pred_check_branch
      %11 = sbr.rel (0) target = $region5
    $region4: #{tpu_custom_call.1} parent=1 // pred_region
      %s13 = ssub.s32 16, 16
      %14 = vsyncadd [#allocation3], %s13
      %s16 = sshll.u32 [#allocation2], 4
      %s17 = int_to_ptr.vmem [resolvable:$true] %s16
      %19 = dma.hbm_to_vmem [thread:$0]  %s0, 16, %s17, [#allocation3]
    $region5: #{tpu_custom_call.1} parent=1 // pred_fallthru
      _
    // Predicated region
    $region6: #{tpu_custom_call.1} parent=1 // pred_check
      _
    $region7: #{tpu_custom_call.1} parent=1 // pred_check_branch
      %21 = sbr.rel (0) target = $region9
    $region8: #{tpu_custom_call.1} parent=1 // pred_region
      %s23 = ssub.s32 640, 640
      %24 = vsyncadd [#allocation6], %s23
      %s25 = sshll.u32 [#allocation5], 4
      %s26 = int_to_ptr.vmem [resolvable:$true] %s25
      %31 = dma.hbm_to_vmem [thread:$0]  %s1, 640, %s26, [#allocation6], 128, 128, 8
    $region9: #{tpu_custom_call.1} parent=1 // pred_fallthru
      _
    // Predicated region
    $region10: #{tpu_custom_call.1} parent=1 // pred_check
      _
    $region11: #{tpu_custom_call.1} parent=1 // pred_check_branch
      %33 = sbr.rel (0) target = $region13
    $region12: #{tpu_custom_call.1} parent=1 // pred_region
      %34 = dma.done [#allocation3], 16
    $region13: #{tpu_custom_call.1} parent=1 // pred_fallthru
      _
    // Predicated region
    $region14: #{tpu_custom_call.1} parent=1 // pred_check
      _
    $region15: #{tpu_custom_call.1} parent=1 // pred_check_branch
      %36 = sbr.rel (0) target = $region17
    $region16: #{tpu_custom_call.1} parent=1 // pred_region
      %37 = dma.done [#allocation6], 640
    $region17: #{tpu_custom_call.1} parent=1 // pred_fallthru
      _
    %v38 = vld [vmem:[#allocation2] sm:$0x1]
    %v39 = vld [vmem:[#allocation5] sm:$0xff]
    %v40 = vld [vmem:[#allocation5 + $0x8] sm:$0xff]
    %v41 = vld [vmem:[#allocation5 + $0x10] sm:$0xff]
    %v42 = vld [vmem:[#allocation5 + $0x18] sm:$0xff]
    %v43 = vld [vmem:[#allocation5 + $0x20] sm:$0x1]
    %45 = vset.pattern.permute.xlu0 33
    %46 = vperm.xlu0 %45, %v39
    %v47 = vpop.permute.xlu0 %46
    %50 = vset.pattern.permute.xlu0 33
    %51 = vperm.xlu0 %50, %v40
    %v52 = vpop.permute.xlu0 %51
    %55 = vset.pattern.permute.xlu0 33
    %56 = vperm.xlu0 %55, %v41
    %v57 = vpop.permute.xlu0 %56
    %60 = vset.pattern.permute.xlu0 33
    %61 = vperm.xlu0 %60, %v42
    %v62 = vpop.permute.xlu0 %61
    %64 = vrot.lane.b32.xlu0 %v39, 96
    %v65 = vpop.permute.xlu0 %64
    %66 = vrot.lane.b32.xlu0 %v40, 96
    %v67 = vpop.permute.xlu0 %66
    %68 = vrot.lane.b32.xlu0 %v41, 96
    %v69 = vpop.permute.xlu0 %68
    %70 = vrot.lane.b32.xlu0 %v42, 96
    %v71 = vpop.permute.xlu0 %70
    %vm72 = vcmask 7168
    %v73 = vsel %vm72, %v65, 0
    %v75 = vsel %vm72, %v67, 0
    %v77 = vsel %vm72, %v69, 0
    %v79 = vsel %vm72, %v71, 0
    %vm81 = vcmask 1040384
    %v83 = vsel %vm81, %v38, 0
    %85 = vmatprep.subr.mxu0 0.0
    %86 = vmatpush1.msra.mxu0 %v83
    %87 = vmatprep.subr.mxu0 0.0
    %88 = vmatpush1.msra.mxu0 0.0
    %89 = vmatprep.subr.mxu0 0.0
    %90 = vmatpush1.msra.mxu0 0.0
    %91 = vmatprep.subr.mxu0 0.0
    %92 = vmatpush1.msra.mxu0 0.0
    %93 = vmatprep.subr.mxu0 0.0
    %94 = vmatpush1.msra.mxu0 0.0
    %95 = vmatprep.subr.mxu0 0.0
    %96 = vmatpush1.msra.mxu0 0.0
    %97 = vmatprep.subr.mxu0 0.0
    %98 = vmatpush1.msra.mxu0 0.0
    %99 = vmatprep.subr.mxu0 0.0
    %100 = vmatpush1.msra.mxu0 0.0
    %101 = vmatprep.subr.mxu0 0.0
    %102 = vmatpush1.msra.mxu0 0.0
    %103 = vmatprep.subr.mxu0 0.0
    %104 = vmatpush1.msra.mxu0 0.0
    %105 = vmatprep.subr.mxu0 0.0
    %106 = vmatpush1.msra.mxu0 0.0
    %107 = vmatprep.subr.mxu0 0.0
    %108 = vmatpush1.msra.mxu0 0.0
    %109 = vmatprep.subr.mxu0 0.0
    %110 = vmatpush1.msra.mxu0 0.0
    %111 = vmatprep.subr.mxu0 0.0
    %112 = vmatpush1.msra.mxu0 0.0
    %113 = vmatprep.subr.mxu0 0.0
    %114 = vmatpush1.msra.mxu0 0.0
    %115 = vmatprep.subr.mxu0 0.0
    %116 = vmatpush1.msra.mxu0 0.0
    %117 = vmatprep.subr.mxu0 0.0
    %118 = vmatpush1.msra.mxu0 0.0
    %119 = vmatprep.subr.mxu0 0.0
    %120 = vmatpush1.msra.mxu0 0.0
    %121 = vmatprep.subr.mxu0 0.0
    %122 = vmatpush1.msra.mxu0 0.0
    %123 = vmatprep.subr.mxu0 0.0
    %124 = vmatpush1.msra.mxu0 0.0
    %125 = vmatprep.subr.mxu0 0.0
    %126 = vmatpush1.msra.mxu0 0.0
    %127 = vmatprep.subr.mxu0 0.0
    %128 = vmatpush1.msra.mxu0 0.0
    %129 = vmatprep.subr.mxu0 0.0
    %130 = vmatpush1.msra.mxu0 0.0
    %131 = vmatprep.subr.mxu0 0.0
    %132 = vmatpush1.msra.mxu0 0.0
    %133 = vmatprep.subr.mxu0 0.0
    %134 = vmatpush1.msra.mxu0 0.0
    %135 = vmatprep.subr.mxu0 0.0
    %136 = vmatpush1.msra.mxu0 0.0
    %137 = vmatprep.subr.mxu0 0.0
    %138 = vmatpush1.msra.mxu0 0.0
    %139 = vmatprep.subr.mxu0 0.0
    %140 = vmatpush1.msra.mxu0 0.0
    %141 = vmatprep.subr.mxu0 0.0
    %142 = vmatpush1.msra.mxu0 0.0
    %143 = vmatprep.subr.mxu0 0.0
    %144 = vmatpush1.msra.mxu0 0.0
    %145 = vmatprep.subr.mxu0 0.0
    %146 = vmatpush1.msra.mxu0 0.0
    %147 = vmatprep.subr.mxu0 0.0
    %148 = vmatpush1.msra.mxu0 0.0
    %149 = vmatprep.mubr.f32.mxu0 0.0
    %150 = vmatmul.mubr.f32.gmra.mrb[0].mxu0 %v73
    %v151 = vpop.f32.mrb[0].mxu0
    %v152 = vadd.f32 %v47, %v151
    %v153 = vpop.f32.mrb[0].mxu0
    %154 = vmatprep.mubr.f32.mxu0 0.0
    %155 = vmatmul.mubr.f32.gmra.mrb[0].mxu0 %v75
    %v156 = vpop.f32.mrb[0].mxu0
    %v157 = vadd.f32 %v52, %v156
    %v158 = vpop.f32.mrb[0].mxu0
    %159 = vmatprep.mubr.f32.mxu0 0.0
    %160 = vmatmul.mubr.f32.gmra.mrb[0].mxu0 %v77
    %v161 = vpop.f32.mrb[0].mxu0
    %v162 = vadd.f32 %v57, %v161
    %v163 = vpop.f32.mrb[0].mxu0
    %164 = vmatprep.mubr.f32.mxu0 0.0
    %165 = vmatmul.mubr.f32.gmra.mrb[0].mxu0 %v79
    %v166 = vpop.f32.mrb[0].mxu0
    %v167 = vadd.f32 %v62, %v166
    %v168 = vpop.f32.mrb[0].mxu0
    %169 = vdwg.mxu0
    %vm170 = vcmp.gt.f32.partialorder %v152, 0.0
    %vm171 = vcmp.gt.f32.partialorder %v157, 0.0
    %vm172 = vcmp.gt.f32.partialorder %v162, 0.0
    %vm173 = vcmp.gt.f32.partialorder %v167, 0.0
    %v174 = vmul.f32 %v152, 1.442695
    %v175 = vpow.pop %v174
    %v176 = vmul.f32 %v157, 1.442695
    %v177 = vpow.pop %v176
    %v178 = vmul.f32 %v162, 1.442695
    %v179 = vpow.pop %v178
    %v180 = vmul.f32 %v167, 1.442695
    %v181 = vpow.pop %v180
    %v182 = vsub.f32 %v175, 1.0
    %v183 = vsub.f32 %v177, 1.0
    %v184 = vsub.f32 %v179, 1.0
    %v185 = vsub.f32 %v181, 1.0
    %v186 = vsel %vm170, %v152, %v182
    %v187 = vsel %vm171, %v157, %v183
    %v188 = vsel %vm172, %v162, %v184
    %v189 = vsel %vm173, %v167, %v185
    %190 = vset.pattern.permute.xlu0 34
    %191 = vperm.xlu0 %190, %v39
    %v192 = vpop.permute.xlu0 %191
    %194 = vset.pattern.permute.xlu0 34
    %195 = vperm.xlu0 %194, %v40
    %v196 = vpop.permute.xlu0 %195
    %198 = vset.pattern.permute.xlu0 34
    %199 = vperm.xlu0 %198, %v41
    %v200 = vpop.permute.xlu0 %199
    %202 = vset.pattern.permute.xlu0 34
    %203 = vperm.xlu0 %202, %v42
    %v204 = vpop.permute.xlu0 %203
    %vm206 = vcmask 261120
    %v207 = vsel %vm206, %v39, 0
    %v209 = vsel %vm206, %v40, 0
    %v211 = vsel %vm206, %v41, 0
    %v213 = vsel %vm206, %v42, 0
    %215 = vmatprep.subr.mxu0 0.0
    %216 = vmatpush1.msra.mxu0 %v186
    %217 = vmatprep.subr.mxu0 0.0
    %218 = vmatpush1.msra.mxu0 %v187
    %219 = vmatprep.subr.mxu0 0.0
    %220 = vmatpush1.msra.mxu0 %v188
    %221 = vmatprep.subr.mxu0 0.0
    %222 = vmatpush1.msra.mxu0 %v189
    %223 = vmatprep.subr.mxu0 0.0
    %224 = vmatpush1.msra.mxu0 0.0
    %225 = vmatprep.subr.mxu0 0.0
    %226 = vmatpush1.msra.mxu0 0.0
    %227 = vmatprep.subr.mxu0 0.0
    %228 = vmatpush1.msra.mxu0 0.0
    %229 = vmatprep.subr.mxu0 0.0
    %230 = vmatpush1.msra.mxu0 0.0
    %231 = vmatprep.subr.mxu0 0.0
    %232 = vmatpush1.msra.mxu0 0.0
    %233 = vmatprep.subr.mxu0 0.0
    %234 = vmatpush1.msra.mxu0 0.0
    %235 = vmatprep.subr.mxu0 0.0
    %236 = vmatpush1.msra.mxu0 0.0
    %237 = vmatprep.subr.mxu0 0.0
    %238 = vmatpush1.msra.mxu0 0.0
    %239 = vmatprep.subr.mxu0 0.0
    %240 = vmatpush1.msra.mxu0 0.0
    %241 = vmatprep.subr.mxu0 0.0
    %242 = vmatpush1.msra.mxu0 0.0
    %243 = vmatprep.subr.mxu0 0.0
    %244 = vmatpush1.msra.mxu0 0.0
    %245 = vmatprep.subr.mxu0 0.0
    %246 = vmatpush1.msra.mxu0 0.0
    %247 = vmatprep.subr.mxu0 0.0
    %248 = vmatpush1.msra.mxu0 0.0
    %249 = vmatprep.subr.mxu0 0.0
    %250 = vmatpush1.msra.mxu0 0.0
    %251 = vmatprep.subr.mxu0 0.0
    %252 = vmatpush1.msra.mxu0 0.0
    %253 = vmatprep.subr.mxu0 0.0
    %254 = vmatpush1.msra.mxu0 0.0
    %255 = vmatprep.subr.mxu0 0.0
    %256 = vmatpush1.msra.mxu0 0.0
    %257 = vmatprep.subr.mxu0 0.0
    %258 = vmatpush1.msra.mxu0 0.0
    %259 = vmatprep.subr.mxu0 0.0
    %260 = vmatpush1.msra.mxu0 0.0
    %261 = vmatprep.subr.mxu0 0.0
    %262 = vmatpush1.msra.mxu0 0.0
    %263 = vmatprep.subr.mxu0 0.0
    %264 = vmatpush1.msra.mxu0 0.0
    %265 = vmatprep.subr.mxu0 0.0
    %266 = vmatpush1.msra.mxu0 0.0
    %267 = vmatprep.subr.mxu0 0.0
    %268 = vmatpush1.msra.mxu0 0.0
    %269 = vmatprep.subr.mxu0 0.0
    %270 = vmatpush1.msra.mxu0 0.0
    %271 = vmatprep.subr.mxu0 0.0
    %272 = vmatpush1.msra.mxu0 0.0
    %273 = vmatprep.subr.mxu0 0.0
    %274 = vmatpush1.msra.mxu0 0.0
    %275 = vmatprep.subr.mxu0 0.0
    %276 = vmatpush1.msra.mxu0 0.0
    %277 = vmatprep.subr.mxu0 0.0
    %278 = vmatpush1.msra.mxu0 0.0
    %279 = vmatprep.mubr.f32.mxu0 0.0
    %280 = vmatmul.mubr.f32.gmra.mrb[0].mxu0 %v207
    %v281 = vpop.f32.mrb[0].mxu0
    %v282 = vadd.f32 %v192, %v281
    %v283 = vpop.f32.mrb[0].mxu0
    %284 = vmatprep.mubr.f32.mxu0 0.0
    %285 = vmatmul.mubr.f32.gmra.mrb[0].mxu0 %v209
    %v286 = vpop.f32.mrb[0].mxu0
    %v287 = vadd.f32 %v196, %v286
    %v288 = vpop.f32.mrb[0].mxu0
    %289 = vmatprep.mubr.f32.mxu0 0.0
    %290 = vmatmul.mubr.f32.gmra.mrb[0].mxu0 %v211
    %v291 = vpop.f32.mrb[0].mxu0
    %v292 = vadd.f32 %v200, %v291
    %v293 = vpop.f32.mrb[0].mxu0
    %294 = vmatprep.mubr.f32.mxu0 0.0
    %295 = vmatmul.mubr.f32.gmra.mrb[0].mxu0 %v213
    %v296 = vpop.f32.mrb[0].mxu0
    %v297 = vadd.f32 %v204, %v296
    %v298 = vpop.f32.mrb[0].mxu0
    %299 = vdwg.mxu0
    %vm300 = vcmp.gt.f32.partialorder %v282, 0.0
    %vm301 = vcmp.gt.f32.partialorder %v287, 0.0
    %vm302 = vcmp.gt.f32.partialorder %v292, 0.0
    %vm303 = vcmp.gt.f32.partialorder %v297, 0.0
    %v304 = vmul.f32 %v282, 1.442695
    %v305 = vpow.pop %v304
    %v306 = vmul.f32 %v287, 1.442695
    %v307 = vpow.pop %v306
    %v308 = vmul.f32 %v292, 1.442695
    %v309 = vpow.pop %v308
    %v310 = vmul.f32 %v297, 1.442695
    %v311 = vpow.pop %v310
    %v312 = vsub.f32 %v305, 1.0
    %v313 = vsub.f32 %v307, 1.0
    %v314 = vsub.f32 %v309, 1.0
    %v315 = vsub.f32 %v311, 1.0
    %v316 = vsel %vm300, %v282, %v312
    %v317 = vsel %vm301, %v287, %v313
    %v318 = vsel %vm302, %v292, %v314
    %v319 = vsel %vm303, %v297, %v315
    %321 = vset.pattern.permute.xlu0 32
    %322 = vperm.xlu0 %321, %v43
    %v323 = vpop.permute.xlu0 %322
    %v325 = vsel %vm206, %v43, 0
    %327 = vmatprep.subr.mxu0 0.0
    %328 = vmatpush1.msra.mxu0 %v316
    %329 = vmatprep.subr.mxu0 0.0
    %330 = vmatpush1.msra.mxu0 %v317
    %331 = vmatprep.subr.mxu0 0.0
    %332 = vmatpush1.msra.mxu0 %v318
    %333 = vmatprep.subr.mxu0 0.0
    %334 = vmatpush1.msra.mxu0 %v319
    %335 = vmatprep.subr.mxu0 0.0
    %336 = vmatpush1.msra.mxu0 0.0
    %337 = vmatprep.subr.mxu0 0.0
    %338 = vmatpush1.msra.mxu0 0.0
    %339 = vmatprep.subr.mxu0 0.0
    %340 = vmatpush1.msra.mxu0 0.0
    %341 = vmatprep.subr.mxu0 0.0
    %342 = vmatpush1.msra.mxu0 0.0
    %343 = vmatprep.subr.mxu0 0.0
    %344 = vmatpush1.msra.mxu0 0.0
    %345 = vmatprep.subr.mxu0 0.0
    %346 = vmatpush1.msra.mxu0 0.0
    %347 = vmatprep.subr.mxu0 0.0
    %348 = vmatpush1.msra.mxu0 0.0
    %349 = vmatprep.subr.mxu0 0.0
    %350 = vmatpush1.msra.mxu0 0.0
    %351 = vmatprep.subr.mxu0 0.0
    %352 = vmatpush1.msra.mxu0 0.0
    %353 = vmatprep.subr.mxu0 0.0
    %354 = vmatpush1.msra.mxu0 0.0
    %355 = vmatprep.subr.mxu0 0.0
    %356 = vmatpush1.msra.mxu0 0.0
    %357 = vmatprep.subr.mxu0 0.0
    %358 = vmatpush1.msra.mxu0 0.0
    %359 = vmatprep.subr.mxu0 0.0
    %360 = vmatpush1.msra.mxu0 0.0
    %361 = vmatprep.subr.mxu0 0.0
    %362 = vmatpush1.msra.mxu0 0.0
    %363 = vmatprep.subr.mxu0 0.0
    %364 = vmatpush1.msra.mxu0 0.0
    %365 = vmatprep.subr.mxu0 0.0
    %366 = vmatpush1.msra.mxu0 0.0
    %367 = vmatprep.subr.mxu0 0.0
    %368 = vmatpush1.msra.mxu0 0.0
    %369 = vmatprep.subr.mxu0 0.0
    %370 = vmatpush1.msra.mxu0 0.0
    %371 = vmatprep.subr.mxu0 0.0
    %372 = vmatpush1.msra.mxu0 0.0
    %373 = vmatprep.subr.mxu0 0.0
    %374 = vmatpush1.msra.mxu0 0.0
    %375 = vmatprep.subr.mxu0 0.0
    %376 = vmatpush1.msra.mxu0 0.0
    %377 = vmatprep.subr.mxu0 0.0
    %378 = vmatpush1.msra.mxu0 0.0
    %379 = vmatprep.subr.mxu0 0.0
    %380 = vmatpush1.msra.mxu0 0.0
    %381 = vmatprep.subr.mxu0 0.0
    %382 = vmatpush1.msra.mxu0 0.0
    %383 = vmatprep.subr.mxu0 0.0
    %384 = vmatpush1.msra.mxu0 0.0
    %385 = vmatprep.subr.mxu0 0.0
    %386 = vmatpush1.msra.mxu0 0.0
    %387 = vmatprep.subr.mxu0 0.0
    %388 = vmatpush1.msra.mxu0 0.0
    %389 = vmatprep.subr.mxu0 0.0
    %390 = vmatpush1.msra.mxu0 0.0
    %391 = vmatprep.mubr.f32.mxu0 0.0
    %392 = vmatmul.mubr.f32.gmra.mrb[0].mxu0 %v325
    %v393 = vpop.f32.mrb[0].mxu0
    %v394 = vadd.f32 %v323, %v393
    %v395 = vpop.f32.mrb[0].mxu0
    %396 = vdwg.mxu0
    %397 = vst [vmem:[#allocation7] sm:$0x1] %v394
    // Predicated region
    $region18: #{tpu_custom_call.1} parent=1 // pred_check
      _
    $region19: #{tpu_custom_call.1} parent=1 // pred_check_branch
      %399 = sbr.rel (0) target = $region21
    $region20: #{tpu_custom_call.1} parent=1 // pred_region
      %s401 = ssub.s32 16, 16
      %402 = vsyncadd [#allocation4], %s401
      %s404 = sshll.u32 [#allocation7], 4
      %s405 = int_to_ptr.vmem [resolvable:$true] %s404
      %407 = dma.vmem_to_hbm [thread:$0]  %s405, 16, %s2, [#allocation4]
    $region21: #{tpu_custom_call.1} parent=1 // pred_fallthru
      _
    // Predicated region
    $region22: #{tpu_custom_call.1} parent=1 // pred_check
      _
    $region23: #{tpu_custom_call.1} parent=1 // pred_check_branch
      %409 = sbr.rel (0) target = $region25
    $region24: #{tpu_custom_call.1} parent=1 // pred_region
      %410 = dma.done [#allocation4], 16
    $region25: #{tpu_custom_call.1} parent=1 // pred_fallthru
      _
    %411 = vsyncpa [#allocation3], 1
    %412 = vsyncpa [#allocation6], 1
    %413 = vsyncpa [#allocation4], 1

</llo_original>
